<compile_context>
chip_gen: v5e
topology: v5e:2x2
jax: 0.10.0
libtpu: 0.0.40
codegen_flags: <defaults>
</compile_context>

<pallas_src>
import functools
import math

import jax
import jax.numpy as jnp
from jax.experimental import pallas as pl
from jax.experimental.pallas import tpu as pltpu


def _round_up(x: int, m: int) -> int:
    return (x + m - 1) // m * m


def _gcn_kernel(*refs, apply_w: bool, x_resident: bool, tk: int):
    """One (row-tile i, K-tile k) grid step.

      acc[i] += bf16(A[i,k]) @ X[k]                 (X bf16, f32 accumulation)
      finalize: y = acc @ W (if apply_w) else acc
                out[i] = relu(norm_i * y + bias)
    """
    if apply_w:
        a_ref, x_ref, norm_i_ref, bias_ref, w_ref, o_ref, acc_ref = refs
    else:
        a_ref, x_ref, norm_i_ref, bias_ref, o_ref, acc_ref = refs
        w_ref = None

    k = pl.program_id(1)

    @pl.when(k == 0)
    def _init():
        acc_ref[...] = jnp.zeros_like(acc_ref)

    # A streamed from HBM at 1 B/elem; upcast on the VPU (exact for 0/1).
    # Via f32 for a robust lowering path; the conversions hide under the A DMA.
    a = a_ref[...].astype(jnp.float32).astype(jnp.bfloat16)

    if x_resident:
        # X is a single VMEM-resident block (constant index_map -> fetched
        # once); pick out the K rows for this step.
        start = pl.multiple_of(k * tk, tk)
        x = x_ref[pl.ds(start, tk), :]
    else:
        x = x_ref[...]

    # Dominant matmul: bf16 MXU inputs, f32 accumulation in VMEM scratch.
    acc_ref[...] += jnp.dot(a, x, preferred_element_type=jnp.float32)

    @pl.when(k == pl.num_programs(1) - 1)
    def _finalize():
        if apply_w:
            y = jnp.dot(acc_ref[...].astype(jnp.bfloat16), w_ref[...],
                        preferred_element_type=jnp.float32)
        else:
            y = acc_ref[...]
        out = y * norm_i_ref[...] + bias_ref[...]
        o_ref[...] = jnp.maximum(out, 0.0).astype(o_ref.dtype)


def gcn_layer(a, h, w, norm, bias):
    """relu(norm * (A @ (norm * (H @ W))) + bias) via a tiled Pallas kernel.

    a: [N, N] dense 0/1 adjacency, h: [N, Fin], w: [Fin, Fout],
    norm: [N, 1], bias: [1, Fout] (all float32). Returns [N, Fout] float32.
    """
    n, fin = h.shape
    fout = w.shape[1]

    fin_pad = _round_up(fin, 128)
    fout_pad = _round_up(fout, 128)

    # Contract the NxN adjacency over the smaller feature dim.  Both orders are
    # algebraically identical to the module since (norm*H)@W = norm*(H@W).
    ah_first = fin_pad <= fout_pad
    f_small = fin_pad if ah_first else fout_pad

    # --- tile selection (lane-dense, amortizes per-step overhead) -----------
    n_pad = _round_up(n, 128)
    if n_pad <= 128:
        tm = tk = n_pad
    else:
        # Largest row tile in {512,256,128} dividing n_pad while keeping >= 2
        # row blocks, so dimension_semantics="parallel" actually splits work
        # across v7x's two TensorCores.
        tm = max(t for t in (512, 256, 128) if n_pad % t == 0 and n_pad // t >= 2)
        tk = max(t for t in (512, 256, 128) if n_pad % t == 0)
    grid = (n_pad // tm, n_pad // tk)

    # --- wrapper-side operand prep (layout plumbing only) --------------------
    # A: 1 byte/elem in HBM (0/1 exact in int8), upcast in-kernel.
    a_p = jnp.pad(a, ((0, n_pad - n), (0, n_pad - n))).astype(jnp.int8)

    # X: K-operand of the dominant matmul, pre-scaled by norm, pre-cast bf16.
    if ah_first:
        x = h * norm                                                # [N, Fin]
    else:
        # Hoist H @ W out of the grid (was recomputed per row tile before).
        x = jnp.dot(h, w, preferred_element_type=jnp.float32) * norm  # [N, Fout]
    x_p = jnp.pad(x, ((0, n_pad - n), (0, f_small - x.shape[1]))
                  ).astype(jnp.bfloat16)

    norm_p = jnp.pad(norm, ((0, n_pad - n), (0, 0)))
    bias_p = jnp.pad(bias, ((0, 0), (0, fout_pad - fout)))
    w_p = jnp.pad(w, ((0, fin_pad - fin), (0, fout_pad - fout))
                  ).astype(jnp.bfloat16)

    # Keep X fully resident (constant index_map -> single HBM fetch) only when
    # it is small enough that even the pipeline's default double-buffering of
    # it stays far under v5e's 16 MiB scoped-VMEM default.
    x_bytes = n_pad * f_small * 2
    x_resident = x_bytes <= 4 * 1024 * 1024

    if x_resident:
        x_spec = pl.BlockSpec((n_pad, f_small), lambda i, k: (0, 0))
    else:
        x_spec = pl.BlockSpec((tk, f_small), lambda i, k: (k, 0))

    in_specs = [
        pl.BlockSpec((tm, tk), lambda i, k: (i, k)),          # A tile (int8)
        x_spec,                                               # X (bf16)
        pl.BlockSpec((tm, 1), lambda i, k: (i, 0)),           # norm @ out rows
        pl.BlockSpec((1, fout_pad), lambda i, k: (0, 0)),     # bias
    ]
    operands = [a_p, x_p, norm_p, bias_p]
    if ah_first:
        in_specs.append(pl.BlockSpec((fin_pad, fout_pad), lambda i, k: (0, 0)))
        operands.append(w_p)                                  # W (bf16, finalize)

    # Advisory cost estimate: count the X re-fetch factor when streamed and
    # only in-kernel flops (the hoisted H@W runs outside the pallas_call).
    x_refetch = 1 if x_resident else (n_pad // tm)
    flops = (2 * n_pad * n_pad * f_small
             + (2 * n_pad * fin_pad * fout_pad if ah_first else 0))
    bytes_accessed = (a_p.size * 1
                      + x_p.size * 2 * x_refetch
                      + norm_p.size * 4 + bias_p.size * 4
                      + (w_p.size * 2 if ah_first else 0)
                      + n_pad * fout_pad * 4)

    out_p = pl.pallas_call(
        functools.partial(_gcn_kernel, apply_w=ah_first,
                          x_resident=x_resident, tk=tk),
        out_shape=jax.ShapeDtypeStruct((n_pad, fout_pad), jnp.float32),
        grid_spec=pltpu.PrefetchScalarGridSpec(
            num_scalar_prefetch=0,
            grid=grid,
            in_specs=in_specs,
            out_specs=pl.BlockSpec((tm, fout_pad), lambda i, k: (i, 0)),
            scratch_shapes=[pltpu.VMEM((tm, f_small), jnp.float32)],
        ),
        compiler_params=pltpu.CompilerParams(
            dimension_semantics=("parallel", "arbitrary")),
        cost_estimate=pl.CostEstimate(
            flops=flops, transcendentals=0, bytes_accessed=bytes_accessed),
    )(*operands)

    # Padded rows evaluate to relu(bias); the slice below removes them -- do not
    # reuse the padded buffer without this slice.
    return out_p[:n, :fout]


def reference(a, h, w, norm, bias):
    """Pure f32 module semantics (eval mode)."""
    hw = jnp.dot(h, w, precision=jax.lax.Precision.HIGHEST) * norm
    ag = jnp.dot(a, hw, precision=jax.lax.Precision.HIGHEST)
    return jnp.maximum(ag * norm + bias, 0.0)


if __name__ == "__main__":
    N, IN_FEATS, OUT_FEATS = 32, 16, 32

    key = jax.random.PRNGKey(0)
    k_h, k_w, k_b, k_adj = jax.random.split(key, 4)

    # Node features.
    h = jax.random.normal(k_h, (N, IN_FEATS), dtype=jnp.float32)

    # Deterministic param init matching reset_parameters():
    # uniform(-stdv, stdv) with stdv = 1/sqrt(out_feats).
    stdv = 1.0 / math.sqrt(OUT_FEATS)
    w = jax.random.uniform(k_w, (IN_FEATS, OUT_FEATS), dtype=jnp.float32,
                           minval=-stdv, maxval=stdv)
    bias = jax.random.uniform(k_b, (1, OUT_FEATS), dtype=jnp.float32,
                              minval=-stdv, maxval=stdv)

    # Random undirected graph with self-loops, dense 0/1 adjacency.
    rand = jax.random.uniform(k_adj, (N, N))
    adj = (rand < 0.2).astype(jnp.float32)
    adj = jnp.maximum(adj, adj.T)
    adj = jnp.maximum(adj, jnp.eye(N, dtype=jnp.float32))

    # Symmetric normalization norm = deg^{-1/2}, shape [N,1] (DGL g.ndata['norm']).
    deg = adj.sum(axis=1, keepdims=True)
    norm = 1.0 / jnp.sqrt(deg)

    out = jax.jit(gcn_layer)(adj, h, w, norm, bias)
    jax.block_until_ready(out)
    assert out.shape == (N, OUT_FEATS)

    # Tolerance covers the bf16 rounding of the norm*H operand and of the
    # finalize acc@W inputs (~2^-9 relative); A is exact in int8/bf16 and all
    # accumulation is f32.
    ref = reference(adj, h, w, norm, bias)
    assert jnp.allclose(out, ref, atol=5e-2, rtol=5e-2), "mismatch vs reference"

    print("KERNEL_OK")
</pallas_src>

<mosaic_0001>
module attributes {stable_mosaic.version = 11 : i64} {
  func.func @_gcn_kernel(%arg0: i32, %arg1: i32, %arg2: memref<128x128xi8, #tpu.memory_space<vmem>>, %arg3: memref<128x128xbf16, #tpu.memory_space<vmem>>, %arg4: memref<128x1xf32, #tpu.memory_space<vmem>>, %arg5: memref<1x128xf32, #tpu.memory_space<vmem>>, %arg6: memref<128x128xbf16, #tpu.memory_space<vmem>>, %arg7: memref<128x128xf32, #tpu.memory_space<vmem>>, %arg8: memref<128x128xf32, #tpu.memory_space<vmem>>) attributes {dimension_semantics = [#tpu.dimension_semantics<parallel>, #tpu.dimension_semantics<arbitrary>], iteration_bounds = array<i64: 1, 1>, scalar_prefetch = 0 : i64, scratch_operands = 1 : i64, tpu.core_type = #tpu.core_type<tc>, window_params = [{transform_indices = @transform_0, window_bounds = array<i64: 128, 128>}, {pipeline_mode = #tpu.pipeline_mode<synchronous>, transform_indices = @transform_1, window_bounds = array<i64: 128, 128>}, {transform_indices = @transform_2, window_bounds = array<i64: 128, 1>}, {pipeline_mode = #tpu.pipeline_mode<synchronous>, transform_indices = @transform_3, window_bounds = array<i64: 1, 128>}, {pipeline_mode = #tpu.pipeline_mode<synchronous>, transform_indices = @transform_4, window_bounds = array<i64: 128, 128>}, {transform_indices = @transform_5, window_bounds = array<i64: 128, 128>}]} {
    %c0_i32 = arith.constant 0 : i32
    %0 = arith.cmpi eq, %arg1, %c0_i32 : i32
    %1 = arith.extui %0 : i1 to i32
    %c0_i32_0 = arith.constant 0 : i32
    %2 = arith.cmpi ne, %1, %c0_i32_0 : i32
    scf.if %2 {
      %cst_9 = arith.constant 0.000000e+00 : f32
      %17 = vector.broadcast %cst_9 : f32 to vector<128x128xf32>
      %c0_10 = arith.constant 0 : index
      %c0_11 = arith.constant 0 : index
      %18 = vector.load %arg8[%c0_10, %c0_11] : memref<128x128xf32, #tpu.memory_space<vmem>>, vector<128x128xf32>
      tpu.vector_store %arg8[%c0_10, %c0_11], %17 {strides = array<i32>} : memref<128x128xf32, #tpu.memory_space<vmem>>, vector<128x128xf32>,
    } else {
    }
    %c0 = arith.constant 0 : index
    %c0_1 = arith.constant 0 : index
    %3 = vector.load %arg2[%c0, %c0_1] : memref<128x128xi8, #tpu.memory_space<vmem>>, vector<128x128xi8>
    %4 = arith.sitofp %3 : vector<128x128xi8> to vector<128x128xf32>
    %5 = arith.truncf %4 : vector<128x128xf32> to vector<128x128xbf16>
    %c128_i32 = arith.constant 128 : i32
    %6 = arith.muli %arg1, %c128_i32 : i32
    %7 = tpu.assume_multiple %6, 128 : i32
    %8 = arith.index_cast %7 : i32 to index
    %c0_2 = arith.constant 0 : index
    %9 = vector.load %arg3[%8, %c0_2] : memref<128x128xbf16, #tpu.memory_space<vmem>>, vector<128x128xbf16>
    %c0_3 = arith.constant 0 : index
    %c0_4 = arith.constant 0 : index
    %10 = vector.load %arg8[%c0_3, %c0_4] : memref<128x128xf32, #tpu.memory_space<vmem>>, vector<128x128xf32>
    %cst = arith.constant dense<0.000000e+00> : vector<128x128xf32>
    %11 = tpu.matmul %5, %9, %cst {dimension_numbers = #tpu.dot_dimension_numbers<[1], [0], [0], [1], [0, 0, 1, 1], [], []>} : vector<128x128xbf16>, vector<128x128xbf16>, vector<128x128xf32> -> vector<128x128xf32>
    %12 = arith.addf %10, %11 : vector<128x128xf32>
    %c0_5 = arith.constant 0 : index
    %c0_6 = arith.constant 0 : index
    %13 = vector.load %arg8[%c0_5, %c0_6] : memref<128x128xf32, #tpu.memory_space<vmem>>, vector<128x128xf32>
    tpu.vector_store %arg8[%c0_5, %c0_6], %12 {strides = array<i32>} : memref<128x128xf32, #tpu.memory_space<vmem>>, vector<128x128xf32>,
    %c0_i32_7 = arith.constant 0 : i32
    %14 = arith.cmpi eq, %arg1, %c0_i32_7 : i32
    %15 = arith.extui %14 : i1 to i32
    %c0_i32_8 = arith.constant 0 : i32
    %16 = arith.cmpi ne, %15, %c0_i32_8 : i32
    scf.if %16 {
      %c0_9 = arith.constant 0 : index
      %c0_10 = arith.constant 0 : index
      %17 = vector.load %arg8[%c0_9, %c0_10] : memref<128x128xf32, #tpu.memory_space<vmem>>, vector<128x128xf32>
      %18 = arith.truncf %17 : vector<128x128xf32> to vector<128x128xbf16>
      %c0_11 = arith.constant 0 : index
      %c0_12 = arith.constant 0 : index
      %19 = vector.load %arg6[%c0_11, %c0_12] : memref<128x128xbf16, #tpu.memory_space<vmem>>, vector<128x128xbf16>
      %cst_13 = arith.constant dense<0.000000e+00> : vector<128x128xf32>
      %20 = tpu.matmul %18, %19, %cst_13 {dimension_numbers = #tpu.dot_dimension_numbers<[1], [0], [0], [1], [0, 0, 1, 1], [], []>} : vector<128x128xbf16>, vector<128x128xbf16>, vector<128x128xf32> -> vector<128x128xf32>
      %c0_14 = arith.constant 0 : index
      %c0_15 = arith.constant 0 : index
      %21 = vector.load %arg4[%c0_14, %c0_15] : memref<128x1xf32, #tpu.memory_space<vmem>>, vector<128x1xf32>
      %22 = vector.broadcast %21 : vector<128x1xf32> to vector<128x128xf32>
      %23 = arith.mulf %20, %22 : vector<128x128xf32>
      %c0_16 = arith.constant 0 : index
      %c0_17 = arith.constant 0 : index
      %24 = vector.load %arg5[%c0_16, %c0_17] : memref<1x128xf32, #tpu.memory_space<vmem>>, vector<1x128xf32>
      %25 = vector.broadcast %24 : vector<1x128xf32> to vector<128x128xf32>
      %26 = arith.addf %23, %25 : vector<128x128xf32>
      %cst_18 = arith.constant 0.000000e+00 : f32
      %27 = vector.broadcast %cst_18 : f32 to vector<128x128xf32>
      %28 = arith.maximumf %26, %27 : vector<128x128xf32>
      %c0_19 = arith.constant 0 : index
      %c0_20 = arith.constant 0 : index
      %29 = vector.load %arg7[%c0_19, %c0_20] : memref<128x128xf32, #tpu.memory_space<vmem>>, vector<128x128xf32>
      tpu.vector_store %arg7[%c0_19, %c0_20], %28 {strides = array<i32>} : memref<128x128xf32, #tpu.memory_space<vmem>>, vector<128x128xf32>,
    } else {
    }
    return
  }
  func.func @transform_0(%arg0: i32, %arg1: i32) -> (i32, i32) {
    %c0_i32 = arith.constant 0 : i32
    return %arg0, %arg1 : i32, i32
  }
  func.func @transform_1(%arg0: i32, %arg1: i32) -> (i32, i32) {
    %c0_i32 = arith.constant 0 : i32
    %c0_i32_0 = arith.constant 0 : i32
    %c0_i32_1 = arith.constant 0 : i32
    return %c0_i32, %c0_i32_0 : i32, i32
  }
  func.func @transform_2(%arg0: i32, %arg1: i32) -> (i32, i32) {
    %c0_i32 = arith.constant 0 : i32
    %c0_i32_0 = arith.constant 0 : i32
    return %arg0, %c0_i32 : i32, i32
  }
  func.func @transform_3(%arg0: i32, %arg1: i32) -> (i32, i32) {
    %c0_i32 = arith.constant 0 : i32
    %c0_i32_0 = arith.constant 0 : i32
    %c0_i32_1 = arith.constant 0 : i32
    return %c0_i32, %c0_i32_0 : i32, i32
  }
  func.func @transform_4(%arg0: i32, %arg1: i32) -> (i32, i32) {
    %c0_i32 = arith.constant 0 : i32
    %c0_i32_0 = arith.constant 0 : i32
    %c0_i32_1 = arith.constant 0 : i32
    return %c0_i32, %c0_i32_0 : i32, i32
  }
  func.func @transform_5(%arg0: i32, %arg1: i32) -> (i32, i32) {
    %c0_i32 = arith.constant 0 : i32
    %c0_i32_0 = arith.constant 0 : i32
    return %arg0, %c0_i32 : i32, i32
  }
}

</mosaic_0001>

<llo_original>
// kernel: gcn_layer.1
$region0: #{gcn_layer.1}
  #allocation0 [shape = 'u32[]', space=smem, size = 0x4, offset = 0x4, fixed_abs, tag = 'smem constant byte address 0x4 - core index']
  #allocation1 [shape = 'u32[72,128]{1,0:T(1,128)}', space=vmem, size = 0x9000, scoped, tag = 'internal scratch']
  #allocation2 [shape = 'f32[128,128]{1,0:T(8,128)}', space=vmem, size = 0x10000, scoped, tag = 'scratch operand']
  %s0 = inlined_call_operand.vmem [shape: s8[128,128], index: 0, kind: input, shape index: {}]
  %s1 = inlined_call_operand.vmem [shape: bf16[128,128], index: 1, kind: input, shape index: {}]
  %s2 = inlined_call_operand.vmem [shape: f32[128,1], index: 2, kind: input, shape index: {}]
  %s3 = inlined_call_operand.vmem [shape: f32[1,128], index: 3, kind: input, shape index: {}]
  %s4 = inlined_call_operand.vmem [shape: bf16[128,128], index: 4, kind: input, shape index: {}]
  %s5 = inlined_call_operand.vmem [shape: f32[128,128], index: 5, kind: output, shape index: {}]
  %s6 = sld [smem:[#allocation0]]
  $region38: #{gcn_layer.1} parent=0
    _
  %s8 = ssub.s32 1, %s6
  %s9 = scalar_select 0, %s8, %s6
  // Predicated region
  $region2: #{gcn_layer.1} parent=0 // pred_check
    _
  $region3: #{gcn_layer.1} parent=0 // pred_check_branch
    %11 = sbr.rel (0) target = $region5
  $region4: #{gcn_layer.1} parent=0 // pred_region
    _
  $region5: #{gcn_layer.1} parent=0 // pred_fallthru
    _
  // Predicated region
  $region6: #{gcn_layer.1} parent=0 // pred_check
    _
  $region7: #{gcn_layer.1} parent=0 // pred_check_branch
    %13 = sbr.rel (0) target = $region9
  $region8: #{gcn_layer.1} parent=0 // pred_region
    _
  $region9: #{gcn_layer.1} parent=0 // pred_fallthru
    _
  // Predicated region
  $region10: #{gcn_layer.1} parent=0 // pred_check
    _
  $region11: #{gcn_layer.1} parent=0 // pred_check_branch
    %15 = sbr.rel (0) target = $region13
  $region12: #{gcn_layer.1} parent=0 // pred_region
    _
  $region13: #{gcn_layer.1} parent=0 // pred_fallthru
    _
  // Predicated region
  $region14: #{gcn_layer.1} parent=0 // pred_check
    _
  $region15: #{gcn_layer.1} parent=0 // pred_check_branch
    %17 = sbr.rel (0) target = $region17
  $region16: #{gcn_layer.1} parent=0 // pred_region
    _
  $region17: #{gcn_layer.1} parent=0 // pred_fallthru
    _
  // Predicated region
  $region18: #{gcn_layer.1} parent=0 // pred_check
    _
  $region19: #{gcn_layer.1} parent=0 // pred_check_branch
    %19 = sbr.rel (0) target = $region21
  $region20: #{gcn_layer.1} parent=0 // pred_region
    _
  $region21: #{gcn_layer.1} parent=0 // pred_fallthru
    _
  %p20 = scmp.eq.s32.totalorder 0, 0
  // Predicated region
  $region22: #{gcn_layer.1} parent=0 // pred_check
    %p21 = pneg %p20
  $region23: #{gcn_layer.1} parent=0 // pred_check_branch
    %23 = sbr.rel (%p21) target = $region25
  $region24: #{gcn_layer.1} parent=0 // pred_region
    %24 = vst [vmem:[#allocation2] sm:$0xff] 0.0
    %25 = vst [vmem:[#allocation2 + $0x8] sm:$0xff] 0.0
    %26 = vst [vmem:[#allocation2 + $0x10] sm:$0xff] 0.0
    %27 = vst [vmem:[#allocation2 + $0x18] sm:$0xff] 0.0
    %28 = vst [vmem:[#allocation2 + $0x20] sm:$0xff] 0.0
    %29 = vst [vmem:[#allocation2 + $0x28] sm:$0xff] 0.0
    %30 = vst [vmem:[#allocation2 + $0x30] sm:$0xff] 0.0
    %31 = vst [vmem:[#allocation2 + $0x38] sm:$0xff] 0.0
    %32 = vst [vmem:[#allocation2 + $0x40] sm:$0xff] 0.0
    %33 = vst [vmem:[#allocation2 + $0x48] sm:$0xff] 0.0
    %34 = vst [vmem:[#allocation2 + $0x50] sm:$0xff] 0.0
    %35 = vst [vmem:[#allocation2 + $0x58] sm:$0xff] 0.0
    %36 = vst [vmem:[#allocation2 + $0x60] sm:$0xff] 0.0
    %37 = vst [vmem:[#allocation2 + $0x68] sm:$0xff] 0.0
    %38 = vst [vmem:[#allocation2 + $0x70] sm:$0xff] 0.0
    %39 = vst [vmem:[#allocation2 + $0x78] sm:$0xff] 0.0
  $region25: #{gcn_layer.1} parent=0 // pred_fallthru
    _
  %v40 = vld [vmem:[%s0] sm:$0xff]
  %v41 = vld [vmem:[%s0 + $0x8] sm:$0xff]
  %v42 = vld [vmem:[%s0 + $0x10] sm:$0xff]
  %v43 = vld [vmem:[%s0 + $0x18] sm:$0xff]
  %v44 = vunpack.c.0.s8 %v40
  %v45 = vunpack.c.1.s8 %v40
  %v46 = vunpack.c.2.s8 %v40
  %v47 = vunpack.c.3.s8 %v40
  %v48 = vunpack.c.0.s8 %v41
  %v49 = vunpack.c.1.s8 %v41
  %v50 = vunpack.c.2.s8 %v41
  %v51 = vunpack.c.3.s8 %v41
  %v52 = vunpack.c.0.s8 %v42
  %v53 = vunpack.c.1.s8 %v42
  %v54 = vunpack.c.2.s8 %v42
  %v55 = vunpack.c.3.s8 %v42
  %v56 = vunpack.c.0.s8 %v43
  %v57 = vunpack.c.1.s8 %v43
  %v58 = vunpack.c.2.s8 %v43
  %v59 = vunpack.c.3.s8 %v43
  %v60 = vcvt.s32.f32 %v44
  %v61 = vcvt.s32.f32 %v45
  %v62 = vcvt.s32.f32 %v46
  %v63 = vcvt.s32.f32 %v47
  %v64 = vcvt.s32.f32 %v48
  %v65 = vcvt.s32.f32 %v49
  %v66 = vcvt.s32.f32 %v50
  %v67 = vcvt.s32.f32 %v51
  %v68 = vcvt.s32.f32 %v52
  %v69 = vcvt.s32.f32 %v53
  %v70 = vcvt.s32.f32 %v54
  %v71 = vcvt.s32.f32 %v55
  %v72 = vcvt.s32.f32 %v56
  %v73 = vcvt.s32.f32 %v57
  %v74 = vcvt.s32.f32 %v58
  %v75 = vcvt.s32.f32 %v59
  %v76 = vpack.c.bf16 %v61, %v60
  %v77 = vpack.c.bf16 %v63, %v62
  %v78 = vpack.c.bf16 %v65, %v64
  %v79 = vpack.c.bf16 %v67, %v66
  %v80 = vpack.c.bf16 %v69, %v68
  %v81 = vpack.c.bf16 %v71, %v70
  %v82 = vpack.c.bf16 %v73, %v72
  %v83 = vpack.c.bf16 %v75, %v74
  %s84 = smul.u32 0, 128
  %s85 = sshra.s32 %s84, 3
  %s86 = sand.u32 %s84, 7
  %s87 = smul.addr %s85, 4
  %s88 = scalar_lea.vmem %s1, %s87
  %v89 = vld [vmem:[%s88] sm:$0xf]
  %v90 = vld [vmem:[%s88 + $0x4] sm:$0xf]
  %v91 = vld [vmem:[%s88 + $0x8] sm:$0xf]
  %v92 = vld [vmem:[%s88 + $0xc] sm:$0xf]
  %v93 = vld [vmem:[%s88 + $0x10] sm:$0xf]
  %v94 = vld [vmem:[%s88 + $0x14] sm:$0xf]
  %v95 = vld [vmem:[%s88 + $0x18] sm:$0xf]
  %v96 = vld [vmem:[%s88 + $0x1c] sm:$0xf]
  %v97 = vld [vmem:[%s88 + $0x20] sm:$0xf]
  %v98 = vld [vmem:[%s88 + $0x24] sm:$0xf]
  %v99 = vld [vmem:[%s88 + $0x28] sm:$0xf]
  %v100 = vld [vmem:[%s88 + $0x2c] sm:$0xf]
  %v101 = vld [vmem:[%s88 + $0x30] sm:$0xf]
  %v102 = vld [vmem:[%s88 + $0x34] sm:$0xf]
  %v103 = vld [vmem:[%s88 + $0x38] sm:$0xf]
  %v104 = vld [vmem:[%s88 + $0x3c] sm:$0xf]
  %v105 = vld [vmem:[#allocation2] sm:$0xff]
  %v106 = vld [vmem:[#allocation2 + $0x8] sm:$0xff]
  %v107 = vld [vmem:[#allocation2 + $0x10] sm:$0xff]
  %v108 = vld [vmem:[#allocation2 + $0x18] sm:$0xff]
  %v109 = vld [vmem:[#allocation2 + $0x20] sm:$0xff]
  %v110 = vld [vmem:[#allocation2 + $0x28] sm:$0xff]
  %v111 = vld [vmem:[#allocation2 + $0x30] sm:$0xff]
  %v112 = vld [vmem:[#allocation2 + $0x38] sm:$0xff]
  %v113 = vld [vmem:[#allocation2 + $0x40] sm:$0xff]
  %v114 = vld [vmem:[#allocation2 + $0x48] sm:$0xff]
  %v115 = vld [vmem:[#allocation2 + $0x50] sm:$0xff]
  %v116 = vld [vmem:[#allocation2 + $0x58] sm:$0xff]
  %v117 = vld [vmem:[#allocation2 + $0x60] sm:$0xff]
  %v118 = vld [vmem:[#allocation2 + $0x68] sm:$0xff]
  %v119 = vld [vmem:[#allocation2 + $0x70] sm:$0xff]
  %v120 = vld [vmem:[#allocation2 + $0x78] sm:$0xff]
  %v137 = vunpack.c.l.b16 %v89
  %v138 = vunpack.c.l.b16 %v90
  %v139 = vunpack.c.l.b16 %v91
  %v140 = vunpack.c.l.b16 %v92
  %v141 = vunpack.c.l.b16 %v93
  %v142 = vunpack.c.l.b16 %v94
  %v143 = vunpack.c.l.b16 %v95
  %v144 = vunpack.c.l.b16 %v96
  %v145 = vunpack.c.l.b16 %v97
  %v146 = vunpack.c.l.b16 %v98
  %v147 = vunpack.c.l.b16 %v99
  %v148 = vunpack.c.l.b16 %v100
  %v149 = vunpack.c.l.b16 %v101
  %v150 = vunpack.c.l.b16 %v102
  %v151 = vunpack.c.l.b16 %v103
  %v152 = vunpack.c.l.b16 %v104
  %v153 = vpack.c.b16 %v138, %v137
  %v154 = vpack.c.b16 %v140, %v139
  %v155 = vpack.c.b16 %v142, %v141
  %v156 = vpack.c.b16 %v144, %v143
  %v157 = vpack.c.b16 %v146, %v145
  %v158 = vpack.c.b16 %v148, %v147
  %v159 = vpack.c.b16 %v150, %v149
  %v160 = vpack.c.b16 %v152, %v151
  %169 = vmatpush.bf16.msra.mxu0 %v160
  %170 = vmatpush.bf16.msra.mxu0 %v159
  %171 = vmatpush.bf16.msra.mxu0 %v158
  %172 = vmatpush.bf16.msra.mxu0 %v157
  %173 = vmatpush.bf16.msra.mxu0 %v156
  %174 = vmatpush.bf16.msra.mxu0 %v155
  %175 = vmatpush.bf16.msra.mxu0 %v154
  %176 = vmatpush.bf16.msra.mxu0 %v153
  %177 = vmatmul.bf16.gmra.mxu0 %v76
  %v178 = vpop.f32.mrf.mxu0
  %v179 = vadd.f32 0.0, %v178
  %v180 = vpop.f32.mrf.mxu0
  %v181 = vadd.f32 0.0, %v180
  %182 = vmatmul.bf16.gmra.mxu0 %v77
  %v183 = vpop.f32.mrf.mxu0
  %v184 = vadd.f32 0.0, %v183
  %v185 = vpop.f32.mrf.mxu0
  %v186 = vadd.f32 0.0, %v185
  %187 = vmatmul.bf16.gmra.mxu0 %v78
  %v188 = vpop.f32.mrf.mxu0
  %v189 = vadd.f32 0.0, %v188
  %v190 = vpop.f32.mrf.mxu0
  %v191 = vadd.f32 0.0, %v190
  %192 = vmatmul.bf16.gmra.mxu0 %v79
  %v193 = vpop.f32.mrf.mxu0
  %v194 = vadd.f32 0.0, %v193
  %v195 = vpop.f32.mrf.mxu0
  %v196 = vadd.f32 0.0, %v195
  %197 = vmatmul.bf16.gmra.mxu0 %v80
  %v198 = vpop.f32.mrf.mxu0
  %v199 = vadd.f32 0.0, %v198
  %v200 = vpop.f32.mrf.mxu0
  %v201 = vadd.f32 0.0, %v200
  %202 = vmatmul.bf16.gmra.mxu0 %v81
  %v203 = vpop.f32.mrf.mxu0
  %v204 = vadd.f32 0.0, %v203
  %v205 = vpop.f32.mrf.mxu0
  %v206 = vadd.f32 0.0, %v205
  %207 = vmatmul.bf16.gmra.mxu0 %v82
  %v208 = vpop.f32.mrf.mxu0
  %v209 = vadd.f32 0.0, %v208
  %v210 = vpop.f32.mrf.mxu0
  %v211 = vadd.f32 0.0, %v210
  %212 = vmatmul.bf16.gmra.mxu0 %v83
  %v213 = vpop.f32.mrf.mxu0
  %v214 = vadd.f32 0.0, %v213
  %v215 = vpop.f32.mrf.mxu0
  %v216 = vadd.f32 0.0, %v215
  %217 = vdwg.mxu0
  %v218 = vadd.f32 %v105, %v179
  %v219 = vadd.f32 %v106, %v181
  %v220 = vadd.f32 %v107, %v184
  %v221 = vadd.f32 %v108, %v186
  %v222 = vadd.f32 %v109, %v189
  %v223 = vadd.f32 %v110, %v191
  %v224 = vadd.f32 %v111, %v194
  %v225 = vadd.f32 %v112, %v196
  %v226 = vadd.f32 %v113, %v199
  %v227 = vadd.f32 %v114, %v201
  %v228 = vadd.f32 %v115, %v204
  %v229 = vadd.f32 %v116, %v206
  %v230 = vadd.f32 %v117, %v209
  %v231 = vadd.f32 %v118, %v211
  %v232 = vadd.f32 %v119, %v214
  %v233 = vadd.f32 %v120, %v216
  %234 = vst [vmem:[#allocation2] sm:$0xff] %v218
  %235 = vst [vmem:[#allocation2 + $0x8] sm:$0xff] %v219
  %236 = vst [vmem:[#allocation2 + $0x10] sm:$0xff] %v220
  %237 = vst [vmem:[#allocation2 + $0x18] sm:$0xff] %v221
  %238 = vst [vmem:[#allocation2 + $0x20] sm:$0xff] %v222
  %239 = vst [vmem:[#allocation2 + $0x28] sm:$0xff] %v223
  %240 = vst [vmem:[#allocation2 + $0x30] sm:$0xff] %v224
  %241 = vst [vmem:[#allocation2 + $0x38] sm:$0xff] %v225
  %242 = vst [vmem:[#allocation2 + $0x40] sm:$0xff] %v226
  %243 = vst [vmem:[#allocation2 + $0x48] sm:$0xff] %v227
  %244 = vst [vmem:[#allocation2 + $0x50] sm:$0xff] %v228
  %245 = vst [vmem:[#allocation2 + $0x58] sm:$0xff] %v229
  %246 = vst [vmem:[#allocation2 + $0x60] sm:$0xff] %v230
  %247 = vst [vmem:[#allocation2 + $0x68] sm:$0xff] %v231
  %248 = vst [vmem:[#allocation2 + $0x70] sm:$0xff] %v232
  %249 = vst [vmem:[#allocation2 + $0x78] sm:$0xff] %v233
  // Predicated region
  $region26: #{gcn_layer.1} parent=0 // pred_check
    %p250 = pneg %p20
  $region27: #{gcn_layer.1} parent=0 // pred_check_branch
    %252 = sbr.rel (%p250) target = $region29
  $region28: #{gcn_layer.1} parent=0 // pred_region
    %v253 = vld [vmem:[#allocation2] sm:$0xff]
    %v254 = vld [vmem:[#allocation2 + $0x8] sm:$0xff]
    %v255 = vld [vmem:[#allocation2 + $0x10] sm:$0xff]
    %v256 = vld [vmem:[#allocation2 + $0x18] sm:$0xff]
    %v257 = vld [vmem:[#allocation2 + $0x20] sm:$0xff]
    %v258 = vld [vmem:[#allocation2 + $0x28] sm:$0xff]
    %v259 = vld [vmem:[#allocation2 + $0x30] sm:$0xff]
    %v260 = vld [vmem:[#allocation2 + $0x38] sm:$0xff]
    %v261 = vld [vmem:[#allocation2 + $0x40] sm:$0xff]
    %v262 = vld [vmem:[#allocation2 + $0x48] sm:$0xff]
    %v263 = vld [vmem:[#allocation2 + $0x50] sm:$0xff]
    %v264 = vld [vmem:[#allocation2 + $0x58] sm:$0xff]
    %v265 = vld [vmem:[#allocation2 + $0x60] sm:$0xff]
    %v266 = vld [vmem:[#allocation2 + $0x68] sm:$0xff]
    %v267 = vld [vmem:[#allocation2 + $0x70] sm:$0xff]
    %v268 = vld [vmem:[#allocation2 + $0x78] sm:$0xff]
    %v269 = vpack.c.bf16 %v254, %v253
    %v270 = vpack.c.bf16 %v256, %v255
    %v271 = vpack.c.bf16 %v258, %v257
    %v272 = vpack.c.bf16 %v260, %v259
    %v273 = vpack.c.bf16 %v262, %v261
    %v274 = vpack.c.bf16 %v264, %v263
    %v275 = vpack.c.bf16 %v266, %v265
    %v276 = vpack.c.bf16 %v268, %v267
    %v277 = vld [vmem:[%s4] sm:$0xf]
    %v278 = vld [vmem:[%s4 + $0x4] sm:$0xf]
    %v279 = vld [vmem:[%s4 + $0x8] sm:$0xf]
    %v280 = vld [vmem:[%s4 + $0xc] sm:$0xf]
    %v281 = vld [vmem:[%s4 + $0x10] sm:$0xf]
    %v282 = vld [vmem:[%s4 + $0x14] sm:$0xf]
    %v283 = vld [vmem:[%s4 + $0x18] sm:$0xf]
    %v284 = vld [vmem:[%s4 + $0x1c] sm:$0xf]
    %v285 = vld [vmem:[%s4 + $0x20] sm:$0xf]
    %v286 = vld [vmem:[%s4 + $0x24] sm:$0xf]
    %v287 = vld [vmem:[%s4 + $0x28] sm:$0xf]
    %v288 = vld [vmem:[%s4 + $0x2c] sm:$0xf]
    %v289 = vld [vmem:[%s4 + $0x30] sm:$0xf]
    %v290 = vld [vmem:[%s4 + $0x34] sm:$0xf]
    %v291 = vld [vmem:[%s4 + $0x38] sm:$0xf]
    %v292 = vld [vmem:[%s4 + $0x3c] sm:$0xf]
    %v309 = vunpack.c.l.b16 %v277
    %v310 = vunpack.c.l.b16 %v278
    %v311 = vunpack.c.l.b16 %v279
    %v312 = vunpack.c.l.b16 %v280
    %v313 = vunpack.c.l.b16 %v281
    %v314 = vunpack.c.l.b16 %v282
    %v315 = vunpack.c.l.b16 %v283
    %v316 = vunpack.c.l.b16 %v284
    %v317 = vunpack.c.l.b16 %v285
    %v318 = vunpack.c.l.b16 %v286
    %v319 = vunpack.c.l.b16 %v287
    %v320 = vunpack.c.l.b16 %v288
    %v321 = vunpack.c.l.b16 %v289
    %v322 = vunpack.c.l.b16 %v290
    %v323 = vunpack.c.l.b16 %v291
    %v324 = vunpack.c.l.b16 %v292
    %v325 = vpack.c.b16 %v310, %v309
    %v326 = vpack.c.b16 %v312, %v311
    %v327 = vpack.c.b16 %v314, %v313
    %v328 = vpack.c.b16 %v316, %v315
    %v329 = vpack.c.b16 %v318, %v317
    %v330 = vpack.c.b16 %v320, %v319
    %v331 = vpack.c.b16 %v322, %v321
    %v332 = vpack.c.b16 %v324, %v323
    %341 = vmatpush.bf16.msra.mxu0 %v332
    %342 = vmatpush.bf16.msra.mxu0 %v331
    %343 = vmatpush.bf16.msra.mxu0 %v330
    %344 = vmatpush.bf16.msra.mxu0 %v329
    %345 = vmatpush.bf16.msra.mxu0 %v328
    %346 = vmatpush.bf16.msra.mxu0 %v327
    %347 = vmatpush.bf16.msra.mxu0 %v326
    %348 = vmatpush.bf16.msra.mxu0 %v325
    %349 = vmatmul.bf16.gmra.mxu0 %v269
    %v350 = vpop.f32.mrf.mxu0
    %v351 = vadd.f32 0.0, %v350
    %v352 = vpop.f32.mrf.mxu0
    %v353 = vadd.f32 0.0, %v352
    %354 = vmatmul.bf16.gmra.mxu0 %v270
    %v355 = vpop.f32.mrf.mxu0
    %v356 = vadd.f32 0.0, %v355
    %v357 = vpop.f32.mrf.mxu0
    %v358 = vadd.f32 0.0, %v357
    %359 = vmatmul.bf16.gmra.mxu0 %v271
    %v360 = vpop.f32.mrf.mxu0
    %v361 = vadd.f32 0.0, %v360
    %v362 = vpop.f32.mrf.mxu0
    %v363 = vadd.f32 0.0, %v362
    %364 = vmatmul.bf16.gmra.mxu0 %v272
    %v365 = vpop.f32.mrf.mxu0
    %v366 = vadd.f32 0.0, %v365
    %v367 = vpop.f32.mrf.mxu0
    %v368 = vadd.f32 0.0, %v367
    %369 = vmatmul.bf16.gmra.mxu0 %v273
    %v370 = vpop.f32.mrf.mxu0
    %v371 = vadd.f32 0.0, %v370
    %v372 = vpop.f32.mrf.mxu0
    %v373 = vadd.f32 0.0, %v372
    %374 = vmatmul.bf16.gmra.mxu0 %v274
    %v375 = vpop.f32.mrf.mxu0
    %v376 = vadd.f32 0.0, %v375
    %v377 = vpop.f32.mrf.mxu0
    %v378 = vadd.f32 0.0, %v377
    %379 = vmatmul.bf16.gmra.mxu0 %v275
    %v380 = vpop.f32.mrf.mxu0
    %v381 = vadd.f32 0.0, %v380
    %v382 = vpop.f32.mrf.mxu0
    %v383 = vadd.f32 0.0, %v382
    %384 = vmatmul.bf16.gmra.mxu0 %v276
    %v385 = vpop.f32.mrf.mxu0
    %v386 = vadd.f32 0.0, %v385
    %v387 = vpop.f32.mrf.mxu0
    %v388 = vadd.f32 0.0, %v387
    %389 = vdwg.mxu0
    %v390 = vld [vmem:[%s2] sm:$0xff]
    %v391 = vld [vmem:[%s2 + $0x8] sm:$0xff]
    %v392 = vld [vmem:[%s2 + $0x10] sm:$0xff]
    %v393 = vld [vmem:[%s2 + $0x18] sm:$0xff]
    %v394 = vld [vmem:[%s2 + $0x20] sm:$0xff]
    %v395 = vld [vmem:[%s2 + $0x28] sm:$0xff]
    %v396 = vld [vmem:[%s2 + $0x30] sm:$0xff]
    %v397 = vld [vmem:[%s2 + $0x38] sm:$0xff]
    %v398 = vld [vmem:[%s2 + $0x40] sm:$0xff]
    %v399 = vld [vmem:[%s2 + $0x48] sm:$0xff]
    %v400 = vld [vmem:[%s2 + $0x50] sm:$0xff]
    %v401 = vld [vmem:[%s2 + $0x58] sm:$0xff]
    %v402 = vld [vmem:[%s2 + $0x60] sm:$0xff]
    %v403 = vld [vmem:[%s2 + $0x68] sm:$0xff]
    %v404 = vld [vmem:[%s2 + $0x70] sm:$0xff]
    %v405 = vld [vmem:[%s2 + $0x78] sm:$0xff]
    %407 = vset.pattern.permute.xlu0 0
    %408 = vperm.xlu0 %407, %v390
    %v409 = vpop.permute.xlu0 %408
    %412 = vset.pattern.permute.xlu0 0
    %413 = vperm.xlu0 %412, %v391
    %v414 = vpop.permute.xlu0 %413
    %417 = vset.pattern.permute.xlu0 0
    %418 = vperm.xlu0 %417, %v392
    %v419 = vpop.permute.xlu0 %418
    %422 = vset.pattern.permute.xlu0 0
    %423 = vperm.xlu0 %422, %v393
    %v424 = vpop.permute.xlu0 %423
    %427 = vset.pattern.permute.xlu0 0
    %428 = vperm.xlu0 %427, %v394
    %v429 = vpop.permute.xlu0 %428
    %432 = vset.pattern.permute.xlu0 0
    %433 = vperm.xlu0 %432, %v395
    %v434 = vpop.permute.xlu0 %433
    %437 = vset.pattern.permute.xlu0 0
    %438 = vperm.xlu0 %437, %v396
    %v439 = vpop.permute.xlu0 %438
    %442 = vset.pattern.permute.xlu0 0
    %443 = vperm.xlu0 %442, %v397
    %v444 = vpop.permute.xlu0 %443
    %447 = vset.pattern.permute.xlu0 0
    %448 = vperm.xlu0 %447, %v398
    %v449 = vpop.permute.xlu0 %448
    %452 = vset.pattern.permute.xlu0 0
    %453 = vperm.xlu0 %452, %v399
    %v454 = vpop.permute.xlu0 %453
    %457 = vset.pattern.permute.xlu0 0
    %458 = vperm.xlu0 %457, %v400
    %v459 = vpop.permute.xlu0 %458
    %462 = vset.pattern.permute.xlu0 0
    %463 = vperm.xlu0 %462, %v401
    %v464 = vpop.permute.xlu0 %463
    %467 = vset.pattern.permute.xlu0 0
    %468 = vperm.xlu0 %467, %v402
    %v469 = vpop.permute.xlu0 %468
    %472 = vset.pattern.permute.xlu0 0
    %473 = vperm.xlu0 %472, %v403
    %v474 = vpop.permute.xlu0 %473
    %477 = vset.pattern.permute.xlu0 0
    %478 = vperm.xlu0 %477, %v404
    %v479 = vpop.permute.xlu0 %478
    %482 = vset.pattern.permute.xlu0 0
    %483 = vperm.xlu0 %482, %v405
    %v484 = vpop.permute.xlu0 %483
    %v486 = vmul.f32 %v351, %v409
    %v487 = vmul.f32 %v353, %v414
    %v488 = vmul.f32 %v356, %v419
    %v489 = vmul.f32 %v358, %v424
    %v490 = vmul.f32 %v361, %v429
    %v491 = vmul.f32 %v363, %v434
    %v492 = vmul.f32 %v366, %v439
    %v493 = vmul.f32 %v368, %v444
    %v494 = vmul.f32 %v371, %v449
    %v495 = vmul.f32 %v373, %v454
    %v496 = vmul.f32 %v376, %v459
    %v497 = vmul.f32 %v378, %v464
    %v498 = vmul.f32 %v381, %v469
    %v499 = vmul.f32 %v383, %v474
    %v500 = vmul.f32 %v386, %v479
    %v501 = vmul.f32 %v388, %v484
    %v502 = vld [vmem:[%s3] sm:$0x1]
    %v504 = vperm.slane %v502, 0
    %v506 = vadd.f32 %v486, %v504
    %v507 = vadd.f32 %v487, %v504
    %v508 = vadd.f32 %v488, %v504
    %v509 = vadd.f32 %v489, %v504
    %v510 = vadd.f32 %v490, %v504
    %v511 = vadd.f32 %v491, %v504
    %v512 = vadd.f32 %v492, %v504
    %v513 = vadd.f32 %v493, %v504
    %v514 = vadd.f32 %v494, %v504
    %v515 = vadd.f32 %v495, %v504
    %v516 = vadd.f32 %v496, %v504
    %v517 = vadd.f32 %v497, %v504
    %v518 = vadd.f32 %v498, %v504
    %v519 = vadd.f32 %v499, %v504
    %v520 = vadd.f32 %v500, %v504
    %v521 = vadd.f32 %v501, %v504
    %v522 = vmax.f32 %v506, 0.0
    %v523 = vmax.f32 %v507, 0.0
    %v524 = vmax.f32 %v508, 0.0
    %v525 = vmax.f32 %v509, 0.0
    %v526 = vmax.f32 %v510, 0.0
    %v527 = vmax.f32 %v511, 0.0
    %v528 = vmax.f32 %v512, 0.0
    %v529 = vmax.f32 %v513, 0.0
    %v530 = vmax.f32 %v514, 0.0
    %v531 = vmax.f32 %v515, 0.0
    %v532 = vmax.f32 %v516, 0.0
    %v533 = vmax.f32 %v517, 0.0
    %v534 = vmax.f32 %v518, 0.0
    %v535 = vmax.f32 %v519, 0.0
    %v536 = vmax.f32 %v520, 0.0
    %v537 = vmax.f32 %v521, 0.0
    %538 = vst [vmem:[%s5] sm:$0xff] %v522
    %539 = vst [vmem:[%s5 + $0x8] sm:$0xff] %v523
    %540 = vst [vmem:[%s5 + $0x10] sm:$0xff] %v524
    %541 = vst [vmem:[%s5 + $0x18] sm:$0xff] %v525
    %542 = vst [vmem:[%s5 + $0x20] sm:$0xff] %v526
    %543 = vst [vmem:[%s5 + $0x28] sm:$0xff] %v527
    %544 = vst [vmem:[%s5 + $0x30] sm:$0xff] %v528
    %545 = vst [vmem:[%s5 + $0x38] sm:$0xff] %v529
    %546 = vst [vmem:[%s5 + $0x40] sm:$0xff] %v530
    %547 = vst [vmem:[%s5 + $0x48] sm:$0xff] %v531
    %548 = vst [vmem:[%s5 + $0x50] sm:$0xff] %v532
    %549 = vst [vmem:[%s5 + $0x58] sm:$0xff] %v533
    %550 = vst [vmem:[%s5 + $0x60] sm:$0xff] %v534
    %551 = vst [vmem:[%s5 + $0x68] sm:$0xff] %v535
    %552 = vst [vmem:[%s5 + $0x70] sm:$0xff] %v536
    %553 = vst [vmem:[%s5 + $0x78] sm:$0xff] %v537
  $region29: #{gcn_layer.1} parent=0 // pred_fallthru
    _
  // Predicated region
  $region30: #{gcn_layer.1} parent=0 // pred_check
    _
  $region31: #{gcn_layer.1} parent=0 // pred_check_branch
    %555 = sbr.rel (0) target = $region33
  $region32: #{gcn_layer.1} parent=0 // pred_region
    _
  $region33: #{gcn_layer.1} parent=0 // pred_fallthru
    _
  // Predicated region
  $region34: #{gcn_layer.1} parent=0 // pred_check
    _
  $region35: #{gcn_layer.1} parent=0 // pred_check_branch
    %557 = sbr.rel (0) target = $region37
  $region36: #{gcn_layer.1} parent=0 // pred_region
    _
  $region37: #{gcn_layer.1} parent=0 // pred_fallthru
    _

</llo_original>
